<compile_context>
chip_gen: v7x
topology: tpu7x:2x2x1
jax: 0.10.0
libtpu: 0.0.40
codegen_flags: <defaults>
</compile_context>

<pallas_src>
import math
import functools
from typing import NamedTuple

import numpy as np
import jax
import jax.numpy as jnp
from jax.experimental import pallas as pl
from jax.experimental.pallas import tpu as pltpu

F32 = jnp.float32
BF16 = jnp.bfloat16

N_HEADS = 8            # CrossAttention heads (fixed by the reference module)
KSIZES = (1, 3, 5)     # Inception_Block_V1 with num_kernels=3
PMAX = max(KSIZES) // 2
N_TAPS = sum(k * k for k in KSIZES)
G_DEPTH = 2            # GraphBlock propagation depth
G_ALPHA = 0.05         # GraphBlock residual mixing


class Cfg(NamedTuple):
    seq_len: int
    pred_len: int
    enc_in: int
    d_model: int
    d_state: int
    d_ff: int
    e_layers: int
    top_k: int
    use_norm: bool


# ----------------------------- in-kernel math helpers -----------------------------

def _gelu(x):
    c = math.sqrt(2.0 / math.pi)
    return 0.5 * x * (1.0 + jnp.tanh(c * (x + 0.044715 * x * x * x)))


def _silu(x):
    return x * (1.0 / (1.0 + jnp.exp(-x)))


def _softplus(x):
    return jnp.maximum(x, 0.0) + jnp.log(1.0 + jnp.exp(-jnp.abs(x)))


def _apply_act(y, act):
    if act == 'gelu':
        return _gelu(y)
    if act == 'silu':
        return _silu(y)
    return y


def _ln(r, g, b, eps=1e-5):
    mu = jnp.mean(r, axis=-1, keepdims=True)
    var = jnp.mean((r - mu) ** 2, axis=-1, keepdims=True)
    return (r - mu) * jax.lax.rsqrt(var + eps) * g + b


def _bdot(a_f32_or_bf16, w_bf16):
    # bf16 MXU operands, f32 accumulation; weights are pre-cast at init.
    return jnp.dot(a_f32_or_bf16.astype(BF16), w_bf16,
                   preferred_element_type=jnp.float32)


# ----------------------------- Pallas kernels -----------------------------

def _linear_nb_kernel(x_ref, w_ref, o_ref, *, act, scale):
    y = _bdot(x_ref[...], w_ref[...])
    if scale != 1.0:
        y = y * scale
    o_ref[...] = _apply_act(y, act)


def _linear_kernel(x_ref, w_ref, b_ref, o_ref, *, act, scale):
    y = _bdot(x_ref[...], w_ref[...])
    if scale != 1.0:
        y = y * scale
    o_ref[...] = _apply_act(y + b_ref[...], act)


def _ln_kernel(x_ref, g_ref, b_ref, o_ref):
    o_ref[...] = _ln(x_ref[...], g_ref[...], b_ref[...])


def _add3_ln_kernel(a_ref, b_ref, c_ref, g_ref, beta_ref, o_ref):
    o_ref[...] = _ln(a_ref[...] + b_ref[...] + c_ref[...], g_ref[...], beta_ref[...])


def _ffn_res_ln_kernel(x_ref, w1_ref, b1_ref, w2_ref, b2_ref, g_ref, beta_ref, o_ref):
    """Fused encoder FFN: GELU(x@W1+b1)@W2 + b2, residual + LayerNorm epilogue."""
    x = x_ref[...]
    h = _gelu(_bdot(x, w1_ref[...]) + b1_ref[...])
    y = _bdot(h, w2_ref[...]) + b2_ref[...]
    o_ref[...] = _ln(x + y, g_ref[...], beta_ref[...])


def _mamba_kernel(x_ref, inw_ref, convw_ref, convb_ref, xpw_ref, dtw_ref, dtb_ref,
                  alogT_ref, dpar_ref, outw_ref, o_ref,
                  dt_s, dtxc_s, bm_s, cm_s, ys_s):
    """One Mamba direction for one batch element (grid axis = batch, 'parallel').

    All projections are hoisted to whole-sequence matmuls; only the inherently
    sequential selective scan runs in a lax.fori_loop over VMEM scratch.
    """
    T = x_ref.shape[1]
    d_state, d_inner = alogT_ref.shape
    dt_rank = dtw_ref.shape[0]

    A_T = -jnp.exp(alogT_ref[...])                       # (d_state, d_inner)
    xb = x_ref[0]                                        # (T, D)
    xz = _bdot(xb, inw_ref[...])                         # (T, 2*d_inner)
    xin = xz[:, :d_inner]
    z = xz[:, d_inner:]
    # causal depthwise conv, kernel width 2
    x_prev = jnp.concatenate(
        [jnp.zeros((1, d_inner), F32), xin[:T - 1, :]], axis=0)
    xc = _silu(x_prev * convw_ref[0:1, :] + xin * convw_ref[1:2, :] + convb_ref[...])
    x_dbl = _bdot(xc, xpw_ref[...])                      # (T, dt_rank + 2*d_state)
    dt = _softplus(_bdot(x_dbl[:, :dt_rank], dtw_ref[...]) + dtb_ref[...])

    dt_s[...] = dt
    dtxc_s[...] = dt * xc
    bm_s[...] = x_dbl[:, dt_rank:dt_rank + d_state]
    cm_s[...] = x_dbl[:, dt_rank + d_state:]

    # TODO(synk): for long T, precompute exp(dt (x) A) in chunks (one vectorized
    # exp per chunk) instead of per-step, and chunk the scratch buffers.
    def body(t, h):
        dt_row = dt_s[pl.ds(t, 1), :]                    # (1, d_inner)
        da_t = jnp.exp(dt_row * A_T)                     # (d_state, d_inner)
        bx_t = bm_s[pl.ds(t, 1), :].T * dtxc_s[pl.ds(t, 1), :]
        h = da_t * h + bx_t
        ys_s[pl.ds(t, 1), :] = jnp.dot(cm_s[pl.ds(t, 1), :], h,
                                       preferred_element_type=F32)
        return h

    jax.lax.fori_loop(0, T, body, jnp.zeros((d_state, d_inner), F32))

    y = (ys_s[...] + xc * dpar_ref[...]) * _silu(z)
    o_ref[0] = _bdot(y, outw_ref[...])


def _cross_attn_kernel(q_ref, kv_ref, wq_ref, bq_ref, wkv_ref, bkv_ref,
                       wo_ref, bo_ref, o_ref, *, n_heads):
    """Fused Q/KV projections + per-head attention + out-proj + residual.

    Grid axis = batch ('parallel').  Attention scale is folded into W_q/b_q.
    """
    D = q_ref.shape[2]
    dk = D // n_heads
    q_in = q_ref[0]                                      # (Lq, D)
    kv_in = kv_ref[0]                                    # (Lk, D)
    qp = _bdot(q_in, wq_ref[...]) + bq_ref[...]
    kvp = _bdot(kv_in, wkv_ref[...]) + bkv_ref[...]
    k = kvp[:, :D]
    v = kvp[:, D:]
    # TODO(synk): for realistic d_k (>=64) switch to a head-major batched
    # dot_general instead of per-head lane slices.
    heads = []
    for h in range(n_heads):
        sl = slice(h * dk, (h + 1) * dk)
        s = jax.lax.dot_general(qp[:, sl].astype(BF16), k[:, sl].astype(BF16),
                                (((1,), (1,)), ((), ())),
                                preferred_element_type=F32)
        s = s - jnp.max(s, axis=-1, keepdims=True)
        p = jnp.exp(s)
        p = p / jnp.sum(p, axis=-1, keepdims=True)       # exact reciprocal
        heads.append(jnp.dot(p.astype(BF16), v[:, sl].astype(BF16),
                             preferred_element_type=F32))
    attn = jnp.concatenate(heads, axis=-1)               # (Lq, D)
    o_ref[0] = _bdot(attn, wo_ref[...]) + bo_ref[...] + q_in


def _graph_kernel(x_ref, nv1_ref, nv2_ref, sw_ref, sb_ref, ew_ref, eb_ref,
                  g_ref, beta_ref, o_ref, *, depth, alpha):
    """Adaptive-adjacency graph propagation, fused (incl. residual + LN)."""
    x = x_ref[0]                                          # (N, D)
    logits = jnp.maximum(jnp.dot(nv1_ref[...], nv2_ref[...],
                                 preferred_element_type=F32), 0.0)
    logits = logits - jnp.max(logits, axis=-1, keepdims=True)
    e = jnp.exp(logits)
    adj = (e / jnp.sum(e, axis=-1, keepdims=True)).astype(BF16)
    h0 = _bdot(x, sw_ref[...]) + sb_ref[...]
    h = h0
    for _ in range(depth):
        h = alpha * h0 + (1.0 - alpha) * jnp.dot(adj, h.astype(BF16),
                                                 preferred_element_type=F32)
    h = _gelu(h)
    out = _bdot(h, ew_ref[...]) + eb_ref[...]
    o_ref[0] = _ln(x + out, g_ref[...], beta_ref[...])


def _head_kernel(a_ref, c0_ref, cw_ref, cb_ref, w1_ref, w2_ref, catb_ref,
                 pw_ref, pb_ref, std_ref, mean_ref, o_ref):
    """Fused head: c_linear + (split) cat_linear + projector + de-normalisation.

    Output is written (Nv, pred_len) per batch (lane-dense); transposed outside.
    """
    a = a_ref[0]                                          # (Nv, D)
    c0 = c0_ref[0]                                        # (T, D)
    c1 = _bdot(c0, cw_ref[...]) + cb_ref[...]             # (T, Nv)
    dec = (_bdot(a, w1_ref[...])
           + jax.lax.dot_general(c1.astype(BF16), w2_ref[...],
                                 (((0,), (0,)), ((), ())),
                                 preferred_element_type=F32)
           + catb_ref[...])                               # (Nv, D)
    dec = _bdot(dec, pw_ref[...]) + pb_ref[...]           # (Nv, P)
    o_ref[0] = dec * std_ref[0] + mean_ref[0]


# ----------------------------- pallas_call plumbing -----------------------------

def _row_tile(M, target=256):
    """Largest multiple-of-8 divisor of M that is <= target (or M itself)."""
    if M <= target:
        return M
    t = (target // 8) * 8
    while t >= 8:
        if M % t == 0:
            return t
        t -= 8
    return M


def _const_spec(a):
    """Full-array block, constant index map (1-D grid)."""
    return pl.BlockSpec(a.shape, lambda b, _nd=a.ndim: (0,) * _nd)


def _row_call(kernel, row_args, const_args, n_out):
    """Row-tiled pallas_call: row args / output tiled over rows, consts resident."""
    M = row_args[0].shape[0]
    tm = _row_tile(M)
    grid = (M // tm,)
    in_specs = [pl.BlockSpec((tm, a.shape[1]), lambda i: (i, 0)) for a in row_args]
    in_specs += [pl.BlockSpec(c.shape, lambda i, _nd=c.ndim: (0,) * _nd)
                 for c in const_args]
    # TODO(synk): set vmem_limit_bytes per-kernel (with <64 MiB headroom) when
    # scaling d_model/d_ff for v7x.
    return pl.pallas_call(
        kernel,
        grid=grid,
        in_specs=in_specs,
        out_specs=pl.BlockSpec((tm, n_out), lambda i: (i, 0)),
        out_shape=jax.ShapeDtypeStruct((M, n_out), F32),
        compiler_params=pltpu.CompilerParams(dimension_semantics=("parallel",)),
    )(*row_args, *const_args)


# ----------------------------- kernel wrappers -----------------------------

def linear(x, w, b=None, act=None, scale=1.0):
    K, N = w.shape
    lead = x.shape[:-1]
    x2 = x.reshape(-1, K)
    if b is None:
        out = _row_call(functools.partial(_linear_nb_kernel, act=act, scale=scale),
                        [x2], [w], N)
    else:
        out = _row_call(functools.partial(_linear_kernel, act=act, scale=scale),
                        [x2], [w, b.reshape(1, N)], N)
    return out.reshape(*lead, N)


def layernorm(x, g, b):
    D = x.shape[-1]
    lead = x.shape[:-1]
    x2 = x.reshape(-1, D)
    out = _row_call(_ln_kernel, [x2], [g.reshape(1, D), b.reshape(1, D)], D)
    return out.reshape(*lead, D)


def add3_layernorm(a, b, c, g, beta):
    D = a.shape[-1]
    lead = a.shape[:-1]
    out = _row_call(_add3_ln_kernel,
                    [a.reshape(-1, D), b.reshape(-1, D), c.reshape(-1, D)],
                    [g.reshape(1, D), beta.reshape(1, D)], D)
    return out.reshape(*lead, D)


def ffn_res_ln(x, w1, b1, w2, b2, g, beta):
    D = x.shape[-1]
    lead = x.shape[:-1]
    out = _row_call(_ffn_res_ln_kernel, [x.reshape(-1, D)],
                    [w1, b1, w2, b2, g, beta], D)
    return out.reshape(*lead, D)


def _stack_taps(x_nhwc):
    """All 1x1/3x3/5x5 'same'-conv taps as shifted bf16 views: (B*H*W, N_TAPS*C)."""
    B, H, W, C = x_nhwc.shape
    # Cast to bf16 BEFORE stacking so the materialised tap tensor is half-size.
    # TODO(synk): gather the shifted views inside the kernel (pl.ds offsets from
    # an SMEM tap table) to avoid materialising N_TAPS copies in HBM entirely.
    xp = jnp.pad(x_nhwc.astype(BF16), ((0, 0), (PMAX, PMAX), (PMAX, PMAX), (0, 0)))
    views = []
    for kk in KSIZES:
        p = kk // 2
        for dy in range(kk):
            for dx in range(kk):
                oy, ox = PMAX - p + dy, PMAX - p + dx
                views.append(xp[:, oy:oy + H, ox:ox + W, :])
    taps = jnp.concatenate(views, axis=-1)                # (B, H, W, N_TAPS*C)
    return taps.reshape(B * H * W, N_TAPS * C)


def inception_forward(p, x_nhwc, act=None):
    """Inception_Block_V1 (3 branches averaged) as ONE K=(N_TAPS*C) matmul."""
    B, H, W, _ = x_nhwc.shape
    O = p['w_flat'].shape[-1]
    taps = _stack_taps(x_nhwc)
    out = linear(taps, p['w_flat'], p['b_avg'], act=act, scale=1.0 / len(KSIZES))
    return out.reshape(B, H, W, O)


def mamba_forward(p, x):
    B, T, D = x.shape
    d_state, d_inner = p['A_logT'].shape
    consts = [p['in_w'], p['conv_w'], p['conv_b'], p['xproj_w'], p['dt_w'],
              p['dt_b'], p['A_logT'], p['D'], p['out_w']]
    return pl.pallas_call(
        _mamba_kernel,
        grid=(B,),
        in_specs=[pl.BlockSpec((1, T, D), lambda b: (b, 0, 0))]
                 + [_const_spec(c) for c in consts],
        out_specs=pl.BlockSpec((1, T, D), lambda b: (b, 0, 0)),
        out_shape=jax.ShapeDtypeStruct((B, T, D), F32),
        scratch_shapes=[pltpu.VMEM((T, d_inner), F32),    # dt
                        pltpu.VMEM((T, d_inner), F32),    # dt * conv(x)
                        pltpu.VMEM((T, d_state), F32),    # B(t)
                        pltpu.VMEM((T, d_state), F32),    # C(t)
                        pltpu.VMEM((T, d_inner), F32)],   # y(t)
        compiler_params=pltpu.CompilerParams(dimension_semantics=("parallel",)),
    )(x, *consts)


def cross_attention_forward(p, q_in, kv_in):
    B, Lq, D = q_in.shape
    Lk = kv_in.shape[1]
    consts = [p['wq_w'], p['wq_b'], p['wkv_w'], p['wkv_b'], p['wo_w'], p['wo_b']]
    return pl.pallas_call(
        functools.partial(_cross_attn_kernel, n_heads=N_HEADS),
        grid=(B,),
        in_specs=[pl.BlockSpec((1, Lq, D), lambda b: (b, 0, 0)),
                  pl.BlockSpec((1, Lk, D), lambda b: (b, 0, 0))]
                 + [_const_spec(c) for c in consts],
        out_specs=pl.BlockSpec((1, Lq, D), lambda b: (b, 0, 0)),
        out_shape=jax.ShapeDtypeStruct((B, Lq, D), F32),
        compiler_params=pltpu.CompilerParams(dimension_semantics=("parallel",)),
    )(q_in, kv_in, *consts)


def graph_block_forward(p, x):
    B, N, D = x.shape
    consts = [p['nv1'], p['nv2'], p['start_w'], p['start_b'],
              p['end_w'], p['end_b'], p['ln_g'], p['ln_b']]
    return pl.pallas_call(
        functools.partial(_graph_kernel, depth=G_DEPTH, alpha=G_ALPHA),
        grid=(B,),
        in_specs=[pl.BlockSpec((1, N, D), lambda b: (b, 0, 0))]
                 + [_const_spec(c) for c in consts],
        out_specs=pl.BlockSpec((1, N, D), lambda b: (b, 0, 0)),
        out_shape=jax.ShapeDtypeStruct((B, N, D), F32),
        compiler_params=pltpu.CompilerParams(dimension_semantics=("parallel",)),
    )(x, *consts)


def head_forward(params, a, c0, std_t, mean_t):
    B, Nn, D = a.shape
    T = c0.shape[1]
    P = params['projector_w'].shape[-1]
    consts = [params['c_w'], params['c_b'], params['cat_w1'], params['cat_w2'],
              params['cat_b'], params['projector_w'], params['projector_b']]
    return pl.pallas_call(
        _head_kernel,
        grid=(B,),
        in_specs=[pl.BlockSpec((1, Nn, D), lambda b: (b, 0, 0)),
                  pl.BlockSpec((1, T, D), lambda b: (b, 0, 0))]
                 + [_const_spec(c) for c in consts]
                 + [pl.BlockSpec((1, Nn, 1), lambda b: (b, 0, 0)),
                    pl.BlockSpec((1, Nn, 1), lambda b: (b, 0, 0))],
        out_specs=pl.BlockSpec((1, Nn, P), lambda b: (b, 0, 0)),
        out_shape=jax.ShapeDtypeStruct((B, Nn, P), F32),
        compiler_params=pltpu.CompilerParams(dimension_semantics=("parallel",)),
    )(a, c0, *consts, std_t, mean_t)


# ----------------------------- module forwards -----------------------------

def data_embedding(params, x):
    """DataEmbedding: circular Conv1d(k=3, no bias) token embedding + sinusoidal PE."""
    B, T, C = x.shape
    xp = jnp.concatenate([x[:, -1:, :], x, x[:, :1, :]], axis=1)
    patches = jnp.concatenate([xp[:, k:k + T, :] for k in range(3)], axis=-1)
    val = linear(patches, params['token_w'])
    return val + params['pos_emb'][None, :T, :]


def inverted_embedding(params, x):
    """DataEmbedding_inverted: Linear(seq_len -> d_model) on [B, N, T]."""
    return linear(jnp.transpose(x, (0, 2, 1)), params['inv_w'], params['inv_b'])


def encoder_layer_forward(p, x):
    mf = mamba_forward(p['mamba_f'], x)
    mb = jnp.flip(mamba_forward(p['mamba_b'], jnp.flip(x, axis=1)), axis=1)
    xn = add3_layernorm(x, mf, mb, p['ln1_g'], p['ln1_b'])
    return ffn_res_ln(xn, p['ff1_w'], p['ff1_b'], p['ff2_w'], p['ff2_b'],
                      p['ln2_g'], p['ln2_b'])


def encoder_forward(p, x):
    for lp in p['layers']:
        x = encoder_layer_forward(lp, x)
    return layernorm(x, p['norm_g'], p['norm_b'])


# ----------------------------- parameter init -----------------------------

def _init(key, shape, scale=None):
    if scale is None:
        scale = 1.0 / math.sqrt(shape[0])
    return scale * jax.random.normal(key, shape, dtype=F32)


def positional_embedding(T, D):
    pos = np.arange(T)[:, None]
    div = np.exp(np.arange(0, D, 2) * -(np.log(10000.0) / D))
    pe = np.zeros((T, D), np.float32)
    pe[:, 0::2] = np.sin(pos * div)
    pe[:, 1::2] = np.cos(pos * div)
    return jnp.asarray(pe)


def init_mamba(key, d_model, d_state):
    d_inner = d_model                         # expand = 1
    dt_rank = max(1, math.ceil(d_model / 16))
    ks = jax.random.split(key, 6)
    return dict(
        in_w=_init(ks[0], (d_model, 2 * d_inner)).astype(BF16),
        conv_w=_init(ks[1], (2, d_inner)),    # depthwise conv, d_conv=2
        conv_b=jnp.zeros((1, d_inner), F32),
        xproj_w=_init(ks[2], (d_inner, dt_rank + 2 * d_state)).astype(BF16),
        dt_w=_init(ks[3], (dt_rank, d_inner)).astype(BF16),
        dt_b=0.1 * jax.random.normal(ks[4], (1, d_inner), dtype=F32),
        A_logT=jnp.log(jnp.tile(jnp.arange(1, d_state + 1, dtype=F32)[:, None],
                                (1, d_inner))),
        D=jnp.ones((1, d_inner), F32),
        out_w=_init(ks[5], (d_inner, d_model)).astype(BF16),
    )


def init_encoder_layer(key, d_model, d_ff, d_state):
    ks = jax.random.split(key, 4)
    return dict(
        mamba_f=init_mamba(ks[0], d_model, d_state),
        mamba_b=init_mamba(ks[1], d_model, d_state),
        ff1_w=_init(ks[2], (d_model, d_ff)).astype(BF16),
        ff1_b=jnp.zeros((1, d_ff), F32),
        ff2_w=_init(ks[3], (d_ff, d_model)).astype(BF16),
        ff2_b=jnp.zeros((1, d_model), F32),
        ln1_g=jnp.ones((1, d_model), F32), ln1_b=jnp.zeros((1, d_model), F32),
        ln2_g=jnp.ones((1, d_model), F32), ln2_b=jnp.zeros((1, d_model), F32),
    )


def init_encoder(key, e_layers, d_model, d_ff, d_state):
    ks = jax.random.split(key, e_layers)
    return dict(layers=[init_encoder_layer(k, d_model, d_ff, d_state) for k in ks],
                norm_g=jnp.ones((1, d_model), F32),
                norm_b=jnp.zeros((1, d_model), F32))


def init_cross_attention(key, d_model):
    ks = jax.random.split(key, 3)
    scale = 1.0 / math.sqrt(d_model // N_HEADS)   # folded into W_q / b_q
    return dict(
        wq_w=(_init(ks[0], (d_model, d_model)) * scale).astype(BF16),
        wq_b=jnp.zeros((1, d_model), F32),
        wkv_w=_init(ks[1], (d_model, 2 * d_model)).astype(BF16),
        wkv_b=jnp.zeros((1, 2 * d_model), F32),
        wo_w=_init(ks[2], (d_model, d_model)).astype(BF16),
        wo_b=jnp.zeros((1, d_model), F32))


def init_inception(key, c_in, c_out):
    w = _init(key, (N_TAPS, c_in, c_out), scale=1.0 / math.sqrt(c_in))
    return dict(w_flat=w.reshape(N_TAPS * c_in, c_out).astype(BF16),
                b_avg=jnp.zeros((1, c_out), F32))   # mean of the branch biases


def init_graphblock(key, n_nodes, d_model, conv_channel, node_dim=32):
    ks = jax.random.split(key, 4)
    return dict(nv1=_init(ks[0], (n_nodes, node_dim)).astype(BF16),
                nv2=_init(ks[1], (node_dim, n_nodes)).astype(BF16),
                start_w=_init(ks[2], (d_model, conv_channel)).astype(BF16),
                start_b=jnp.zeros((1, conv_channel), F32),
                end_w=_init(ks[3], (conv_channel, d_model)).astype(BF16),
                end_b=jnp.zeros((1, d_model), F32),
                ln_g=jnp.ones((1, d_model), F32),
                ln_b=jnp.zeros((1, d_model), F32))


def init_model(key, cfg: Cfg):
    ks = jax.random.split(key, 13)
    d = cfg.d_model
    return dict(
        token_w=_init(ks[0], (3 * cfg.enc_in, d)).astype(BF16),
        inv_w=_init(ks[1], (cfg.seq_len, d)).astype(BF16),
        inv_b=jnp.zeros((1, d), F32),
        encoder=init_encoder(ks[2], cfg.e_layers, d, cfg.d_ff, cfg.d_state),
        encoder1=init_encoder(ks[3], cfg.e_layers, d, cfg.d_ff, cfg.d_state),
        projector_w=_init(ks[4], (d, cfg.pred_len)).astype(BF16),
        projector_b=jnp.zeros((1, cfg.pred_len), F32),
        gconv=init_graphblock(ks[5], cfg.enc_in, d, 32),
        incep1=init_inception(ks[6], d, 32),
        incep2=init_inception(ks[7], 32, d),
        cat_w1=_init(ks[8], (d, d), scale=1.0 / math.sqrt(d + cfg.seq_len)).astype(BF16),
        cat_w2=_init(ks[9], (cfg.seq_len, d),
                     scale=1.0 / math.sqrt(d + cfg.seq_len)).astype(BF16),
        cat_b=jnp.zeros((1, d), F32),
        c_w=_init(ks[10], (d, cfg.enc_in)).astype(BF16),
        c_b=jnp.zeros((1, cfg.enc_in), F32),
        ca1=init_cross_attention(ks[11], d),
        ca2=init_cross_attention(ks[12], d),
        pos_emb=positional_embedding(cfg.seq_len, d),
    )


# ----------------------------- full model (two jitted stages) -----------------------------

@functools.partial(jax.jit, static_argnames=('use_norm',))
def stage1(params, x_enc, use_norm):
    x_enc = x_enc.astype(F32)
    B, _, Nv = x_enc.shape
    if use_norm:
        means = jnp.mean(x_enc, axis=1, keepdims=True)
        x = x_enc - means
        stdev = jnp.sqrt(jnp.var(x, axis=1, keepdims=True) + 1e-5)
        x = x / stdev
    else:
        means = jnp.zeros((B, 1, Nv), F32)
        stdev = jnp.ones((B, 1, Nv), F32)
        x = x_enc
    enc_x = data_embedding(params, x)            # [B, T, d_model]
    enc_out = inverted_embedding(params, x)      # [B, enc_in, d_model]
    amp = jnp.abs(jnp.fft.rfft(enc_x, axis=1))
    freq = amp.mean(axis=0).mean(axis=-1)
    freq = freq.at[0].set(0.0)
    return enc_x, enc_out, means, stdev, freq, amp.mean(axis=-1)


@functools.partial(jax.jit, static_argnames=('scales', 'top'))
def stage2(params, enc_x, enc_out, means, stdev, amp_mean, *, scales, top):
    B, T, D = enc_x.shape
    k = len(scales)

    # ---- multi-scale Inception path (both scales batched through the encoder)
    res_list = []
    for scale in scales:
        if T % scale != 0:
            length = (T // scale + 1) * scale
            pad = jnp.zeros((B, length - T, D), F32)
            out = jnp.concatenate([enc_x, pad], axis=1)
        else:
            length = T
            out = enc_x
        out = out.reshape(B, length // scale, scale, D)          # NHWC, C = d_model
        h = inception_forward(params['incep1'], out, act='gelu')
        h = inception_forward(params['incep2'], h, act=None)
        res_list.append(h.reshape(B, length, D)[:, :T, :])
    stacked = jnp.concatenate(res_list, axis=0)                  # [k*B, T, D]
    enc_res = encoder_forward(params['encoder'], stacked)
    res_f_m = jnp.stack([enc_res[i * B:(i + 1) * B] for i in range(k)], axis=-1)

    sw = jax.nn.softmax(amp_mean[:, list(top)], axis=1)[:, None, None, :]
    res_f_m = res_f_m * sw
    out_c_m = jnp.sum(res_f_m * sw, axis=-1) + enc_x             # (double weighting, as torch)

    # ---- graph path
    out_g = graph_block_forward(params['gconv'], enc_out)
    out_g_m = encoder_forward(params['encoder1'], out_g) + enc_out

    # ---- cross attention (residuals fused in-kernel)
    out_g_cross = cross_attention_forward(params['ca1'], out_g_m, out_c_m)
    out_c_cross = cross_attention_forward(params['ca2'], out_c_m, out_g_m)

    # ---- fused head: c_linear + cat_linear + projector + de-normalisation
    std_t = jnp.transpose(stdev, (0, 2, 1))                      # (B, Nv, 1)
    mean_t = jnp.transpose(means, (0, 2, 1))
    dec = head_forward(params, out_g_cross, out_c_cross, std_t, mean_t)
    dec = jnp.transpose(dec, (0, 2, 1))                          # (B, pred_len, Nv)
    return dec


def model_forward(params, cfg: Cfg, x_enc):
    enc_x, enc_out, means, stdev, freq, amp_mean = stage1(
        params, x_enc, use_norm=cfg.use_norm)
    # TODO(synk): the top-k period selection drives *static* reshapes, so only
    # the tiny frequency vector crosses to the host between the two stages.
    freq_h = np.asarray(jax.device_get(freq))
    order = np.argsort(-freq_h)[:cfg.top_k]
    top = tuple(int(i) for i in order)
    scales = tuple(int(cfg.seq_len // i) for i in top)
    return stage2(params, enc_x, enc_out, means, stdev, amp_mean,
                  scales=scales, top=top)


# ----------------------------- main -----------------------------

if __name__ == "__main__":
    cfg = Cfg(seq_len=16, pred_len=8, enc_in=4, d_model=32, d_state=8,
              d_ff=32, e_layers=1, top_k=2, use_norm=True)
    key = jax.random.PRNGKey(0)
    pkey, xkey = jax.random.split(key)
    params = init_model(pkey, cfg)
    x_enc = jax.random.normal(xkey, (2, cfg.seq_len, cfg.enc_in), dtype=F32)

    out = model_forward(params, cfg, x_enc)
    out = jax.block_until_ready(out)
    assert out.shape == (2, cfg.pred_len, cfg.enc_in), out.shape
    assert bool(jnp.all(jnp.isfinite(out)))
    print("KERNEL_OK")
</pallas_src>

<mosaic_0001>
module attributes {stable_mosaic.version = 11 : i64} {
  func.func @_linear_kernel(%arg0: i32, %arg1: memref<8x16xf32, #tpu.memory_space<vmem>>, %arg2: memref<16x32xbf16, #tpu.memory_space<vmem>>, %arg3: memref<1x32xf32, #tpu.memory_space<vmem>>, %arg4: memref<8x32xf32, #tpu.memory_space<vmem>>) attributes {dimension_semantics = [#tpu.dimension_semantics<parallel>], iteration_bounds = array<i64: 1>, scalar_prefetch = 0 : i64, scratch_operands = 0 : i64, tpu.core_type = #tpu.core_type<tc>, window_params = [{transform_indices = @transform_0, window_bounds = array<i64: 8, 16>}, {pipeline_mode = #tpu.pipeline_mode<synchronous>, transform_indices = @transform_1, window_bounds = array<i64: 16, 32>}, {pipeline_mode = #tpu.pipeline_mode<synchronous>, transform_indices = @transform_2, window_bounds = array<i64: 1, 32>}, {transform_indices = @transform_3, window_bounds = array<i64: 8, 32>}]} {
    %c0 = arith.constant 0 : index
    %c0_0 = arith.constant 0 : index
    %0 = vector.load %arg1[%c0, %c0_0] : memref<8x16xf32, #tpu.memory_space<vmem>>, vector<8x16xf32>
    %c0_1 = arith.constant 0 : index
    %c0_2 = arith.constant 0 : index
    %1 = vector.load %arg2[%c0_1, %c0_2] : memref<16x32xbf16, #tpu.memory_space<vmem>>, vector<16x32xbf16>
    %2 = arith.truncf %0 : vector<8x16xf32> to vector<8x16xbf16>
    %cst = arith.constant dense<0.000000e+00> : vector<8x32xf32>
    %3 = tpu.matmul %2, %1, %cst {dimension_numbers = #tpu.dot_dimension_numbers<[1], [0], [0], [1], [0, 0, 1, 1], [], []>} : vector<8x16xbf16>, vector<16x32xbf16>, vector<8x32xf32> -> vector<8x32xf32>
    %c0_3 = arith.constant 0 : index
    %c0_4 = arith.constant 0 : index
    %4 = vector.load %arg3[%c0_3, %c0_4] : memref<1x32xf32, #tpu.memory_space<vmem>>, vector<1x32xf32>
    %5 = vector.broadcast %4 : vector<1x32xf32> to vector<8x32xf32>
    %6 = arith.addf %3, %5 : vector<8x32xf32>
    %c0_5 = arith.constant 0 : index
    %c0_6 = arith.constant 0 : index
    %7 = vector.load %arg4[%c0_5, %c0_6] : memref<8x32xf32, #tpu.memory_space<vmem>>, vector<8x32xf32>
    tpu.vector_store %arg4[%c0_5, %c0_6], %6 {strides = array<i32>} : memref<8x32xf32, #tpu.memory_space<vmem>>, vector<8x32xf32>,
    return
  }
  func.func @transform_0(%arg0: i32) -> (i32, i32) {
    %c0_i32 = arith.constant 0 : i32
    %c0_i32_0 = arith.constant 0 : i32
    return %arg0, %c0_i32 : i32, i32
  }
  func.func @transform_1(%arg0: i32) -> (i32, i32) {
    %c0_i32 = arith.constant 0 : i32
    %c0_i32_0 = arith.constant 0 : i32
    %c0_i32_1 = arith.constant 0 : i32
    return %c0_i32, %c0_i32_0 : i32, i32
  }
  func.func @transform_2(%arg0: i32) -> (i32, i32) {
    %c0_i32 = arith.constant 0 : i32
    %c0_i32_0 = arith.constant 0 : i32
    %c0_i32_1 = arith.constant 0 : i32
    return %c0_i32, %c0_i32_0 : i32, i32
  }
  func.func @transform_3(%arg0: i32) -> (i32, i32) {
    %c0_i32 = arith.constant 0 : i32
    %c0_i32_0 = arith.constant 0 : i32
    return %arg0, %c0_i32 : i32, i32
  }
}

module attributes {stable_mosaic.version = 11 : i64} {
  func.func @_linear_nb_kernel(%arg0: i32, %arg1: memref<32x12xf32, #tpu.memory_space<vmem>>, %arg2: memref<12x32xbf16, #tpu.memory_space<vmem>>, %arg3: memref<32x32xf32, #tpu.memory_space<vmem>>) attributes {dimension_semantics = [#tpu.dimension_semantics<parallel>], iteration_bounds = array<i64: 1>, scalar_prefetch = 0 : i64, scratch_operands = 0 : i64, tpu.core_type = #tpu.core_type<tc>, window_params = [{transform_indices = @transform_0, window_bounds = array<i64: 32, 12>}, {pipeline_mode = #tpu.pipeline_mode<synchronous>, transform_indices = @transform_1, window_bounds = array<i64: 12, 32>}, {transform_indices = @transform_2, window_bounds = array<i64: 32, 32>}]} {
    %c0 = arith.constant 0 : index
    %c0_0 = arith.constant 0 : index
    %0 = vector.load %arg1[%c0, %c0_0] : memref<32x12xf32, #tpu.memory_space<vmem>>, vector<32x12xf32>
    %c0_1 = arith.constant 0 : index
    %c0_2 = arith.constant 0 : index
    %1 = vector.load %arg2[%c0_1, %c0_2] : memref<12x32xbf16, #tpu.memory_space<vmem>>, vector<12x32xbf16>
    %2 = arith.truncf %0 : vector<32x12xf32> to vector<32x12xbf16>
    %cst = arith.constant dense<0.000000e+00> : vector<32x32xf32>
    %3 = tpu.matmul %2, %1, %cst {dimension_numbers = #tpu.dot_dimension_numbers<[1], [0], [0], [1], [0, 0, 1, 1], [], []>} : vector<32x12xbf16>, vector<12x32xbf16>, vector<32x32xf32> -> vector<32x32xf32>
    %c0_3 = arith.constant 0 : index
    %c0_4 = arith.constant 0 : index
    %4 = vector.load %arg3[%c0_3, %c0_4] : memref<32x32xf32, #tpu.memory_space<vmem>>, vector<32x32xf32>
    tpu.vector_store %arg3[%c0_3, %c0_4], %3 {strides = array<i32>} : memref<32x32xf32, #tpu.memory_space<vmem>>, vector<32x32xf32>,
    return
  }
  func.func @transform_0(%arg0: i32) -> (i32, i32) {
    %c0_i32 = arith.constant 0 : i32
    %c0_i32_0 = arith.constant 0 : i32
    return %arg0, %c0_i32 : i32, i32
  }
  func.func @transform_1(%arg0: i32) -> (i32, i32) {
    %c0_i32 = arith.constant 0 : i32
    %c0_i32_0 = arith.constant 0 : i32
    %c0_i32_1 = arith.constant 0 : i32
    return %c0_i32, %c0_i32_0 : i32, i32
  }
  func.func @transform_2(%arg0: i32) -> (i32, i32) {
    %c0_i32 = arith.constant 0 : i32
    %c0_i32_0 = arith.constant 0 : i32
    return %arg0, %c0_i32 : i32, i32
  }
}

</mosaic_0001>

<llo_original>
// kernel: stage1.2
$region0: #{stage1.2}
  #allocation0 [shape = 'u32[]', space=smem, size = 0x4, offset = 0x4, fixed_abs, tag = 'smem constant byte address 0x4 - core index']
  #allocation1 [shape = 'u32[144,128]{1,0:T(1,128)}', space=vmem, size = 0x12000, scoped, tag = 'internal scratch']
  %s0 = inlined_call_operand.vmem [shape: f32[32,12], index: 0, kind: input, shape index: {}]
  %s1 = inlined_call_operand.vmem [shape: bf16[12,32], index: 1, kind: input, shape index: {}]
  %s2 = inlined_call_operand.vmem [shape: f32[32,32], index: 2, kind: output, shape index: {}]
  %s3 = sld [smem:[#allocation0]]
  $region18: #{stage1.2} parent=0
    _
  %s5 = ssub.s32 1, %s3
  %s6 = scalar_select 0, %s5, %s3
  // Predicated region
  $region2: #{stage1.2} parent=0 // pred_check
    _
  $region3: #{stage1.2} parent=0 // pred_check_branch
    %8 = sbr.rel (0) target = $region5
  $region4: #{stage1.2} parent=0 // pred_region
    _
  $region5: #{stage1.2} parent=0 // pred_fallthru
    _
  // Predicated region
  $region6: #{stage1.2} parent=0 // pred_check
    _
  $region7: #{stage1.2} parent=0 // pred_check_branch
    %10 = sbr.rel (0) target = $region9
  $region8: #{stage1.2} parent=0 // pred_region
    _
  $region9: #{stage1.2} parent=0 // pred_fallthru
    _
  %v12 = vld [vmem:[%s0] sm:$0xff]
  %v13 = vld [vmem:[%s0 + $0x8] sm:$0xff]
  %v14 = vld [vmem:[%s0 + $0x10] sm:$0xff]
  %v15 = vld [vmem:[%s0 + $0x18] sm:$0xff]
  %v16 = vld [vmem:[%s1] sm:$0xf]
  %v17 = vld [vmem:[%s1 + $0x4] sm:$0x3]
  %v18 = vpack.c.bf16 %v13, %v12
  %v19 = vpack.c.bf16 %v15, %v14
  %v22 = vunpack.c.l.b16 %v16
  %v23 = vunpack.c.l.b16 %v17
  %v24 = vpack.c.b16 %v23, %v22
  %vm25 = vcmask 97280
  %v27 = vsel %vm25, %v18, 0
  %v30 = vsel %vm25, %v19, 0
  %vm32 = vcmask 1045504
  %v34 = vsel %vm32, %v24, 0
  %36 = vmatprep.subr.bf16.mxu0 0
  %37 = vmatpush1.bf16.msra.mxu0 %v34
  %38 = vmatprep.subr.bf16.mxu0 0
  %39 = vmatpush1.bf16.msra.mxu0 0
  %40 = vmatprep.subr.bf16.mxu0 0
  %41 = vmatpush1.bf16.msra.mxu0 0
  %42 = vmatprep.subr.bf16.mxu0 0
  %43 = vmatpush1.bf16.msra.mxu0 0
  %44 = vmatprep.subr.bf16.mxu0 0
  %45 = vmatpush1.bf16.msra.mxu0 0
  %46 = vmatprep.subr.bf16.mxu0 0
  %47 = vmatpush1.bf16.msra.mxu0 0
  %48 = vmatprep.subr.bf16.mxu0 0
  %49 = vmatpush1.bf16.msra.mxu0 0
  %50 = vmatprep.subr.bf16.mxu0 0
  %51 = vmatpush1.bf16.msra.mxu0 0
  %52 = vmatprep.subr.bf16.mxu0 0
  %53 = vmatpush1.bf16.msra.mxu0 0
  %54 = vmatprep.subr.bf16.mxu0 0
  %55 = vmatpush1.bf16.msra.mxu0 0
  %56 = vmatprep.subr.bf16.mxu0 0
  %57 = vmatpush1.bf16.msra.mxu0 0
  %58 = vmatprep.subr.bf16.mxu0 0
  %59 = vmatpush1.bf16.msra.mxu0 0
  %60 = vmatprep.subr.bf16.mxu0 0
  %61 = vmatpush1.bf16.msra.mxu0 0
  %62 = vmatprep.subr.bf16.mxu0 0
  %63 = vmatpush1.bf16.msra.mxu0 0
  %64 = vmatprep.subr.bf16.mxu0 0
  %65 = vmatpush1.bf16.msra.mxu0 0
  %66 = vmatprep.subr.bf16.mxu0 0
  %67 = vmatpush1.bf16.msra.mxu0 0
  %68 = vmatprep.mubr.bf16.mxu0 0
  %69 = vmatmul.mubr.bf16.gmra.mrb[0].mxu0 %v27
  %v70 = vpop.f32.mrb[0].mxu0
  %v71 = vadd.f32 0.0, %v70
  %v72 = vpop.f32.mrb[0].mxu0
  %v73 = vpop.f32.mrb[0].mxu0
  %v74 = vadd.f32 0.0, %v73
  %v75 = vpop.f32.mrb[0].mxu0
  %76 = vmatprep.mubr.bf16.mxu0 0
  %77 = vmatmul.mubr.bf16.gmra.mrb[0].mxu0 %v30
  %v78 = vpop.f32.mrb[0].mxu0
  %v79 = vadd.f32 0.0, %v78
  %v80 = vpop.f32.mrb[0].mxu0
  %v81 = vpop.f32.mrb[0].mxu0
  %v82 = vadd.f32 0.0, %v81
  %v83 = vpop.f32.mrb[0].mxu0
  %84 = vdwg.mxu0
  %vm85 = vcmask 261120
  %86 = vst.msk [vmem:[%s2] sm:$0xff] %vm85, %v71
  %87 = vst.msk [vmem:[%s2 + $0x8] sm:$0xff] %vm85, %v74
  %88 = vst.msk [vmem:[%s2 + $0x10] sm:$0xff] %vm85, %v79
  %89 = vst.msk [vmem:[%s2 + $0x18] sm:$0xff] %vm85, %v82
  // Predicated region
  $region10: #{stage1.2} parent=0 // pred_check
    _
  $region11: #{stage1.2} parent=0 // pred_check_branch
    %91 = sbr.rel (0) target = $region13
  $region12: #{stage1.2} parent=0 // pred_region
    _
  $region13: #{stage1.2} parent=0 // pred_fallthru
    _
  // Predicated region
  $region14: #{stage1.2} parent=0 // pred_check
    _
  $region15: #{stage1.2} parent=0 // pred_check_branch
    %93 = sbr.rel (0) target = $region17
  $region16: #{stage1.2} parent=0 // pred_region
    _
  $region17: #{stage1.2} parent=0 // pred_fallthru
    _

// kernel: stage1.3
$region0: #{stage1.3}
  #allocation0 [shape = 'u32[]', space=smem, size = 0x4, offset = 0x4, fixed_abs, tag = 'smem constant byte address 0x4 - core index']
  #allocation1 [shape = 'u32[144,128]{1,0:T(1,128)}', space=vmem, size = 0x12000, scoped, tag = 'internal scratch']
  %s0 = inlined_call_operand.vmem [shape: f32[8,16], index: 0, kind: input, shape index: {}]
  %s1 = inlined_call_operand.vmem [shape: bf16[16,32], index: 1, kind: input, shape index: {}]
  %s2 = inlined_call_operand.vmem [shape: f32[1,32], index: 2, kind: input, shape index: {}]
  %s3 = inlined_call_operand.hbm [shape: f32[8,32], index: 3, kind: output, shape index: {}]
  %s4 = sld [smem:[#allocation0]]
  $region22: #{stage1.3} parent=0
    _
  %s6 = ssub.s32 1, %s4
  %s7 = scalar_select 0, %s6, %s4
  $region1: #{stage1.3} parent=0
    #allocation2 [shape = 'u8[4096]{0}', space=vmem, size = 0x1000, scoped, tag = 'output window, operand 0, single buffered']
    #allocation3 [shape = 's32[1]{0}', space=sflag, size = 0x4, scoped, tag = 'scoped memory for stage1.3']
    %8 = vsyncpa [#allocation3], 0
    // Predicated region
    $region2: #{stage1.3} parent=1 // pred_check
      _
    $region3: #{stage1.3} parent=1 // pred_check_branch
      %10 = sbr.rel (0) target = $region5
    $region4: #{stage1.3} parent=1 // pred_region
      _
    $region5: #{stage1.3} parent=1 // pred_fallthru
      _
    // Predicated region
    $region6: #{stage1.3} parent=1 // pred_check
      _
    $region7: #{stage1.3} parent=1 // pred_check_branch
      %12 = sbr.rel (0) target = $region9
    $region8: #{stage1.3} parent=1 // pred_region
      _
    $region9: #{stage1.3} parent=1 // pred_fallthru
      _
    // Predicated region
    $region10: #{stage1.3} parent=1 // pred_check
      _
    $region11: #{stage1.3} parent=1 // pred_check_branch
      %14 = sbr.rel (0) target = $region13
    $region12: #{stage1.3} parent=1 // pred_region
      _
    $region13: #{stage1.3} parent=1 // pred_fallthru
      _
    %v16 = vld [vmem:[%s0] sm:$0xff]
    %v17 = vld [vmem:[%s1] sm:$0xf]
    %v18 = vld [vmem:[%s1 + $0x4] sm:$0xf]
    %v19 = vpack.c.bf16 %v16, %v16
    %v20 = vld [vmem:[%s2] sm:$0x1]
    %v22 = vlaneseq
    %v23 = vshrl.u32 %v22, 7
    %v24 = vsub.s32 0, %v23
    %v25 = vrot.slane %v20, %v24
    %v29 = vunpack.c.l.b16 %v17
    %v30 = vunpack.c.l.b16 %v18
    %v31 = vpack.c.b16 %v30, %v29
    %vm33 = vcmask 130048
    %v35 = vsel %vm33, %v19, 0
    %37 = vmatprep.subr.bf16.mxu0 0
    %38 = vmatpush1.bf16.msra.mxu0 %v31
    %39 = vmatprep.subr.bf16.mxu0 0
    %40 = vmatpush1.bf16.msra.mxu0 0
    %41 = vmatprep.subr.bf16.mxu0 0
    %42 = vmatpush1.bf16.msra.mxu0 0
    %43 = vmatprep.subr.bf16.mxu0 0
    %44 = vmatpush1.bf16.msra.mxu0 0
    %45 = vmatprep.subr.bf16.mxu0 0
    %46 = vmatpush1.bf16.msra.mxu0 0
    %47 = vmatprep.subr.bf16.mxu0 0
    %48 = vmatpush1.bf16.msra.mxu0 0
    %49 = vmatprep.subr.bf16.mxu0 0
    %50 = vmatpush1.bf16.msra.mxu0 0
    %51 = vmatprep.subr.bf16.mxu0 0
    %52 = vmatpush1.bf16.msra.mxu0 0
    %53 = vmatprep.subr.bf16.mxu0 0
    %54 = vmatpush1.bf16.msra.mxu0 0
    %55 = vmatprep.subr.bf16.mxu0 0
    %56 = vmatpush1.bf16.msra.mxu0 0
    %57 = vmatprep.subr.bf16.mxu0 0
    %58 = vmatpush1.bf16.msra.mxu0 0
    %59 = vmatprep.subr.bf16.mxu0 0
    %60 = vmatpush1.bf16.msra.mxu0 0
    %61 = vmatprep.subr.bf16.mxu0 0
    %62 = vmatpush1.bf16.msra.mxu0 0
    %63 = vmatprep.subr.bf16.mxu0 0
    %64 = vmatpush1.bf16.msra.mxu0 0
    %65 = vmatprep.subr.bf16.mxu0 0
    %66 = vmatpush1.bf16.msra.mxu0 0
    %67 = vmatprep.subr.bf16.mxu0 0
    %68 = vmatpush1.bf16.msra.mxu0 0
    %69 = vmatprep.mubr.bf16.mxu0 0
    %70 = vmatmul.mubr.bf16.gmra.mrb[0].mxu0 %v35
    %v71 = vpop.f32.mrb[0].mxu0
    %v72 = vadd.f32 %v25, %v71
    %v73 = vpop.f32.mrb[0].mxu0
    %v74 = vpop.f32.mrb[0].mxu0
    %v75 = vpop.f32.mrb[0].mxu0
    %76 = vdwg.mxu0
    %vm77 = vcmask 261120
    %78 = vst.msk [vmem:[#allocation2] sm:$0xff] %vm77, %v72
    // Predicated region
    $region14: #{stage1.3} parent=1 // pred_check
      _
    $region15: #{stage1.3} parent=1 // pred_check_branch
      %80 = sbr.rel (0) target = $region17
    $region16: #{stage1.3} parent=1 // pred_region
      %s82 = ssub.s32 128, 128
      %83 = vsyncadd [#allocation3], %s82
      %s85 = sshll.u32 [#allocation2], 4
      %s86 = int_to_ptr.vmem [resolvable:$true] %s85
      %88 = dma.vmem_to_hbm [thread:$0]  %s86, 128, %s3, [#allocation3]
    $region17: #{stage1.3} parent=1 // pred_fallthru
      _
    // Predicated region
    $region18: #{stage1.3} parent=1 // pred_check
      _
    $region19: #{stage1.3} parent=1 // pred_check_branch
      %90 = sbr.rel (0) target = $region21
    $region20: #{stage1.3} parent=1 // pred_region
      %91 = dma.done [#allocation3], 128
    $region21: #{stage1.3} parent=1 // pred_fallthru
      _
    %92 = vsyncpa [#allocation3], 1

</llo_original>
